<compile_context>
chip_gen: v5e
topology: v5e:2x2
jax: 0.10.0
libtpu: 0.0.40
codegen_flags: <defaults>
</compile_context>

<pallas_src>
import functools
import math

import jax
import jax.numpy as jnp
from jax import lax
from jax.experimental import pallas as pl
from jax.experimental.pallas import tpu as pltpu

_SUB = 8            # sublanes per vreg
_LANE = 128         # lanes per vreg
_ROWS_CAP = 8192    # rows per block tile  -> 4 MiB f32 per input per block
_CHUNK_ROWS = 512   # rows per in-kernel chunk -> bounds VMEM temporaries
_TARGET_BLOCK_BYTES = 4 * 1024 * 1024
_VMEM_LIMIT_BYTES = 48 * 1024 * 1024


def _round_up(x, m):
    return -(-x // m) * m


def _largest_divisor_leq(n, cap):
    cap = max(1, min(n, cap))
    for d in range(cap, 0, -1):
        if n % d == 0:
            return d
    return 1


def _bce_loss(p, t):
    # PyTorch BCELoss clamps each log term at -100 before combining.
    log_p = jnp.maximum(jnp.log(p), -100.0)
    log_1mp = jnp.maximum(jnp.log(1.0 - p), -100.0)
    return -(t * log_p + (1.0 - t) * log_1mp)


def _fold_rows(x, n_blk, rows):
    # (n_blk, rows, 128) -> (n_blk, 8, 128): add aligned (8,128) vreg groups
    # (pure VALU, no per-chunk XLU cross-lane reduction).
    return jnp.sum(x.reshape(n_blk, rows // _SUB, _SUB, _LANE), axis=1)


def _loss_sum_kernel(pred_ref, target_ref, loss_ref, part_ref, *,
                     n_blk, rows, chunk, n_chunks, rows_valid, tiles_per_cs,
                     need_mask):
    r = pl.program_id(2)

    @pl.when(r == 0)
    def _():
        part_ref[...] = jnp.zeros_like(part_ref)

    base = (pl.program_id(0) * tiles_per_cs + r) * rows

    @pl.loop(0, n_chunks)
    def _(c):
        off = pl.multiple_of(c * chunk, _SUB)
        p = pred_ref[:, pl.ds(off, chunk), :].astype(jnp.float32)
        t = target_ref[:, pl.ds(off, chunk), :].astype(jnp.float32)
        loss = _bce_loss(p, t)
        # Cache the per-element loss for pass 2 (out-of-bounds rows of a ragged
        # tile are dropped by Pallas on writeback).
        loss_ref[:, pl.ds(off, chunk), :] = loss
        if need_mask:
            rid = lax.broadcasted_iota(jnp.int32, (n_blk, chunk, _LANE), 1)
            valid = (rid + (base + off)) < rows_valid
            loss = jnp.where(valid, loss, 0.0)     # select, not multiply (NaN-safe)
        part_ref[...] += _fold_rows(loss, n_blk, chunk)[None]


def _ohem_apply_kernel(thr_ref, loss_ref, num_ref, den_ref, *,
                       n_blk, rows, chunk, n_chunks, rows_valid, tiles_per_cs,
                       need_mask):
    r = pl.program_id(2)

    @pl.when(r == 0)
    def _():
        num_ref[...] = jnp.zeros_like(num_ref)
        den_ref[...] = jnp.zeros_like(den_ref)

    thr = thr_ref[0]                       # global OHEM threshold (SMEM scalar)
    base = (pl.program_id(0) * tiles_per_cs + r) * rows

    @pl.loop(0, n_chunks)
    def _(c):
        off = pl.multiple_of(c * chunk, _SUB)
        loss = loss_ref[:, pl.ds(off, chunk), :]
        hard = loss > thr
        if need_mask:
            rid = lax.broadcasted_iota(jnp.int32, (n_blk, chunk, _LANE), 1)
            hard = jnp.logical_and(hard, (rid + (base + off)) < rows_valid)
        num_ref[...] += _fold_rows(jnp.where(hard, loss, 0.0), n_blk, chunk)[None]
        den_ref[...] += _fold_rows(jnp.where(hard, 1.0, 0.0), n_blk, chunk)[None]


@functools.partial(jax.jit, static_argnames=("cast_target_to_bf16",))
def adaptive_ohem_cross_entropy(pred, target, cast_target_to_bf16=False):
    """pred, target: (N, C, H, W), pred in [0, 1]. Returns per-sample OHEM loss (N,)."""
    N = pred.shape[0]
    K = math.prod(pred.shape[1:])

    if cast_target_to_bf16:
        # Halves the target HBM stream (biggest lever on v5e/v6e); exact only
        # for hard 0/1 targets.
        target = target.astype(jnp.bfloat16)

    # ---- pack each sample's K elements into lane-dense (rows, 128) form --------
    Rp = _round_up(pl.cdiv(K, _LANE), _SUB)      # rows per sample (multiple of 8)
    Kp = Rp * _LANE
    pred2 = pred.reshape(N, K)
    targ2 = target.reshape(N, K)
    if Kp != K:
        # Only when K % 1024 != 0; < 1024 inert pad elements per sample
        # (pred=1, target=1 -> BCE loss == 0, never selected by the > mask).
        pred2 = jnp.pad(pred2, ((0, 0), (0, Kp - K)), constant_values=1.0)
        targ2 = jnp.pad(targ2, ((0, 0), (0, Kp - K)), constant_values=1.0)
    pred3 = pred2.reshape(N, Rp, _LANE)
    targ3 = targ2.reshape(N, Rp, _LANE)

    # ---- tiling -----------------------------------------------------------------
    if Rp <= _CHUNK_ROWS:
        rows, chunk = Rp, Rp
    else:
        rows = min(_ROWS_CAP, _round_up(Rp, _CHUNK_ROWS))
        chunk = _CHUNK_ROWS
    n_chunks = rows // chunk
    n_r_tiles = pl.cdiv(Rp, rows)

    # Batch several samples per block when one sample is small, so every DMA
    # block stays in the multi-MiB range and per-grid-step overhead is amortized.
    per_sample_bytes = rows * _LANE * 4
    n_blk = _largest_divisor_leq(N, max(1, _TARGET_BLOCK_BYTES // per_sample_bytes))
    n_nb = N // n_blk

    # Core split: if there is a single sample block, split the row-tile axis into
    # a leading parallel axis of 2 so both v7x TensorCores get work.
    n_cs = 2 if (n_nb == 1 and n_r_tiles >= 2) else 1
    tiles_per_cs = pl.cdiv(n_r_tiles, n_cs)
    need_mask = (n_cs * tiles_per_cs * rows) > Rp

    def data_idx(cs, nb, r):
        t = jnp.minimum(cs * tiles_per_cs + r, n_r_tiles - 1)  # clamp dummy tiles
        return (nb, t, 0)

    data_spec = pl.BlockSpec((n_blk, rows, _LANE), data_idx)
    part_spec = pl.BlockSpec((1, n_blk, _SUB, _LANE), lambda cs, nb, r: (cs, nb, 0, 0))
    part_shape = jax.ShapeDtypeStruct((n_cs, N, _SUB, _LANE), jnp.float32)

    cparams = pltpu.CompilerParams(
        dimension_semantics=("parallel", "parallel", "arbitrary"),
        vmem_limit_bytes=_VMEM_LIMIT_BYTES)

    kern_kwargs = dict(n_blk=n_blk, rows=rows, chunk=chunk, n_chunks=n_chunks,
                       rows_valid=Rp, tiles_per_cs=tiles_per_cs,
                       need_mask=need_mask)

    # ---- pass 1: BCE loss -> f32 loss cache + per-sample partial sums ----------
    loss_cache, loss_part = pl.pallas_call(
        functools.partial(_loss_sum_kernel, **kern_kwargs),
        out_shape=(jax.ShapeDtypeStruct((N, Rp, _LANE), jnp.float32), part_shape),
        grid=(n_cs, n_nb, tiles_per_cs),
        in_specs=[data_spec, data_spec],
        out_specs=(data_spec, part_spec),
        compiler_params=cparams,
    )(pred3, targ3)

    # Global mean over the *real* (unpadded) element count.
    thr = (jnp.sum(loss_part) / float(N * K)).astype(jnp.float32).reshape(1)

    # ---- pass 2: threshold mask over the cached loss (no log() recompute) ------
    num_part, den_part = pl.pallas_call(
        functools.partial(_ohem_apply_kernel, **kern_kwargs),
        out_shape=(part_shape, part_shape),
        grid=(n_cs, n_nb, tiles_per_cs),
        in_specs=[pl.BlockSpec(memory_space=pltpu.MemorySpace.SMEM), data_spec],
        out_specs=(part_spec, part_spec),
        compiler_params=cparams,
    )(thr, loss_cache)

    num = jnp.sum(num_part, axis=(0, 2, 3))
    den = jnp.sum(den_part, axis=(0, 2, 3))
    # Matches PyTorch: if no pixels exceed the threshold, the result is NaN (0/0).
    return (num / den).astype(pred.dtype)


def _reference(pred, target):
    p = pred.astype(jnp.float32)
    t = target.astype(jnp.float32)
    loss = -(t * jnp.maximum(jnp.log(p), -100.0)
             + (1.0 - t) * jnp.maximum(jnp.log(1.0 - p), -100.0))
    thr = loss.mean()
    mask = (loss > thr).astype(jnp.float32)
    loss = loss * mask
    return loss.sum(axis=(1, 2, 3)) / mask.sum(axis=(1, 2, 3))


if __name__ == "__main__":
    key = jax.random.PRNGKey(0)
    k1, k2 = jax.random.split(key)

    N, C, H, W = 2, 4, 16, 16
    # pred must be a probability (BCELoss expects inputs in [0, 1]).
    pred = jax.nn.sigmoid(jax.random.normal(k1, (N, C, H, W), dtype=jnp.float32))
    target = (jax.random.uniform(k2, (N, C, H, W)) > 0.5).astype(jnp.float32)

    out = adaptive_ohem_cross_entropy(pred, target)
    out = jax.block_until_ready(out)

    ref = _reference(pred, target)
    assert out.shape == (N,)
    assert jnp.allclose(out, ref, rtol=1e-5, atol=1e-5), (out, ref)

    print("KERNEL_OK")
</pallas_src>

<mosaic_0001>
module attributes {stable_mosaic.version = 11 : i64} {
  func.func @_loss_sum_kernel(%arg0: i32, %arg1: i32, %arg2: i32, %arg3: memref<2x8x128xf32, #tpu.memory_space<vmem>>, %arg4: memref<2x8x128xf32, #tpu.memory_space<vmem>>, %arg5: memref<2x8x128xf32, #tpu.memory_space<vmem>>, %arg6: memref<1x2x8x128xf32, #tpu.memory_space<vmem>>) attributes {dimension_semantics = [#tpu.dimension_semantics<parallel>, #tpu.dimension_semantics<parallel>, #tpu.dimension_semantics<arbitrary>], iteration_bounds = array<i64: 1, 1, 1>, scalar_prefetch = 0 : i64, scratch_operands = 0 : i64, tpu.core_type = #tpu.core_type<tc>, window_params = [{transform_indices = @transform_0, window_bounds = array<i64: 2, 8, 128>}, {transform_indices = @transform_1, window_bounds = array<i64: 2, 8, 128>}, {transform_indices = @transform_2, window_bounds = array<i64: 2, 8, 128>}, {transform_indices = @transform_3, window_bounds = array<i64: 1, 2, 8, 128>}]} {
    %c0_i32 = arith.constant 0 : i32
    %0 = arith.cmpi eq, %arg2, %c0_i32 : i32
    %1 = arith.extui %0 : i1 to i32
    %c0_i32_0 = arith.constant 0 : i32
    %2 = arith.cmpi ne, %1, %c0_i32_0 : i32
    scf.if %2 {
      %cst_22 = arith.constant 0.000000e+00 : f32
      %34 = vector.broadcast %cst_22 : f32 to vector<1x2x8x128xf32>
      %c0_23 = arith.constant 0 : index
      %c0_24 = arith.constant 0 : index
      %c0_25 = arith.constant 0 : index
      %c0_26 = arith.constant 0 : index
      %35 = vector.load %arg6[%c0_23, %c0_24, %c0_25, %c0_26] : memref<1x2x8x128xf32, #tpu.memory_space<vmem>>, vector<1x2x8x128xf32>
      tpu.vector_store %arg6[%c0_23, %c0_24, %c0_25, %c0_26], %34 {strides = array<i32>} : memref<1x2x8x128xf32, #tpu.memory_space<vmem>>, vector<1x2x8x128xf32>,
    } else {
    }
    %c0_i32_1 = arith.constant 0 : i32
    %c1_i32 = arith.constant 1 : i32
    %3 = arith.muli %c0_i32_1, %c1_i32 : i32
    %c0_i32_2 = arith.constant 0 : i32
    %4 = arith.addi %c0_i32_2, %3 : i32
    %c8_i32 = arith.constant 8 : i32
    %5 = arith.muli %4, %c8_i32 : i32
    %6 = tpu.assume_multiple %5, 8 : i32
    %c0 = arith.constant 0 : index
    %7 = arith.index_cast %6 : i32 to index
    %c0_3 = arith.constant 0 : index
    %8 = vector.load %arg3[%c0, %7, %c0_3] : memref<2x8x128xf32, #tpu.memory_space<vmem>>, vector<2x8x128xf32>
    %c0_4 = arith.constant 0 : index
    %9 = arith.index_cast %6 : i32 to index
    %c0_5 = arith.constant 0 : index
    %10 = vector.load %arg4[%c0_4, %9, %c0_5] : memref<2x8x128xf32, #tpu.memory_space<vmem>>, vector<2x8x128xf32>
    %11 = math.log %8 : vector<2x8x128xf32>
    %cst = arith.constant -1.000000e+02 : f32
    %12 = vector.broadcast %cst : f32 to vector<2x8x128xf32>
    %13 = arith.maximumf %11, %12 : vector<2x8x128xf32>
    %cst_6 = arith.constant 1.000000e+00 : f32
    %14 = vector.broadcast %cst_6 : f32 to vector<2x8x128xf32>
    %15 = arith.subf %14, %8 : vector<2x8x128xf32>
    %16 = math.log %15 : vector<2x8x128xf32>
    %cst_7 = arith.constant -1.000000e+02 : f32
    %17 = vector.broadcast %cst_7 : f32 to vector<2x8x128xf32>
    %18 = arith.maximumf %16, %17 : vector<2x8x128xf32>
    %19 = arith.mulf %10, %13 : vector<2x8x128xf32>
    %cst_8 = arith.constant 1.000000e+00 : f32
    %20 = vector.broadcast %cst_8 : f32 to vector<2x8x128xf32>
    %21 = arith.subf %20, %10 : vector<2x8x128xf32>
    %22 = arith.mulf %21, %18 : vector<2x8x128xf32>
    %23 = arith.addf %19, %22 : vector<2x8x128xf32>
    %cst_9 = arith.constant 0.000000e+00 : f32
    %24 = vector.broadcast %cst_9 : f32 to vector<2x8x128xf32>
    %25 = arith.subf %24, %23 : vector<2x8x128xf32>
    %c0_10 = arith.constant 0 : index
    %26 = arith.index_cast %6 : i32 to index
    %c0_11 = arith.constant 0 : index
    %27 = vector.load %arg5[%c0_10, %26, %c0_11] : memref<2x8x128xf32, #tpu.memory_space<vmem>>, vector<2x8x128xf32>
    tpu.vector_store %arg5[%c0_10, %26, %c0_11], %25 {strides = array<i32>} : memref<2x8x128xf32, #tpu.memory_space<vmem>>, vector<2x8x128xf32>,
    %c0_12 = arith.constant 0 : index
    %c0_13 = arith.constant 0 : index
    %c0_14 = arith.constant 0 : index
    %c0_15 = arith.constant 0 : index
    %28 = vector.load %arg6[%c0_12, %c0_13, %c0_14, %c0_15] : memref<1x2x8x128xf32, #tpu.memory_space<vmem>>, vector<1x2x8x128xf32>
    %29 = vector.shape_cast %25 : vector<2x8x128xf32> to vector<2x1x8x128xf32>
    %cst_16 = arith.constant dense<0.000000e+00> : vector<2x8x128xf32>
    %30 = vector.multi_reduction <add>, %29, %cst_16 [1] : vector<2x1x8x128xf32> to vector<2x8x128xf32>
    %31 = vector.shape_cast %30 : vector<2x8x128xf32> to vector<1x2x8x128xf32>
    %32 = arith.addf %28, %31 : vector<1x2x8x128xf32>
    %c0_17 = arith.constant 0 : index
    %c0_18 = arith.constant 0 : index
    %c0_19 = arith.constant 0 : index
    %c0_20 = arith.constant 0 : index
    %33 = vector.load %arg6[%c0_17, %c0_18, %c0_19, %c0_20] : memref<1x2x8x128xf32, #tpu.memory_space<vmem>>, vector<1x2x8x128xf32>
    tpu.vector_store %arg6[%c0_17, %c0_18, %c0_19, %c0_20], %32 {strides = array<i32>} : memref<1x2x8x128xf32, #tpu.memory_space<vmem>>, vector<1x2x8x128xf32>,
    %c1_i32_21 = arith.constant 1 : i32
    return
  }
  func.func @transform_0(%arg0: i32, %arg1: i32, %arg2: i32) -> (i32, i32, i32) {
    %c1_i32 = arith.constant 1 : i32
    %0 = arith.muli %arg0, %c1_i32 : i32
    %1 = arith.addi %0, %arg2 : i32
    %c0_i32 = arith.constant 0 : i32
    %2 = arith.minsi %1, %c0_i32 : i32
    %c0_i32_0 = arith.constant 0 : i32
    %c0_i32_1 = arith.constant 0 : i32
    return %arg1, %2, %c0_i32_0 : i32, i32, i32
  }
  func.func @transform_1(%arg0: i32, %arg1: i32, %arg2: i32) -> (i32, i32, i32) {
    %c1_i32 = arith.constant 1 : i32
    %0 = arith.muli %arg0, %c1_i32 : i32
    %1 = arith.addi %0, %arg2 : i32
    %c0_i32 = arith.constant 0 : i32
    %2 = arith.minsi %1, %c0_i32 : i32
    %c0_i32_0 = arith.constant 0 : i32
    %c0_i32_1 = arith.constant 0 : i32
    return %arg1, %2, %c0_i32_0 : i32, i32, i32
  }
  func.func @transform_2(%arg0: i32, %arg1: i32, %arg2: i32) -> (i32, i32, i32) {
    %c1_i32 = arith.constant 1 : i32
    %0 = arith.muli %arg0, %c1_i32 : i32
    %1 = arith.addi %0, %arg2 : i32
    %c0_i32 = arith.constant 0 : i32
    %2 = arith.minsi %1, %c0_i32 : i32
    %c0_i32_0 = arith.constant 0 : i32
    %c0_i32_1 = arith.constant 0 : i32
    return %arg1, %2, %c0_i32_0 : i32, i32, i32
  }
  func.func @transform_3(%arg0: i32, %arg1: i32, %arg2: i32) -> (i32, i32, i32, i32) {
    %c0_i32 = arith.constant 0 : i32
    %c0_i32_0 = arith.constant 0 : i32
    %c0_i32_1 = arith.constant 0 : i32
    return %arg0, %arg1, %c0_i32, %c0_i32_0 : i32, i32, i32, i32
  }
}

module attributes {stable_mosaic.version = 11 : i64} {
  func.func @_ohem_apply_kernel(%arg0: i32, %arg1: i32, %arg2: i32, %arg3: memref<1xf32, #tpu.memory_space<smem>>, %arg4: memref<2x8x128xf32, #tpu.memory_space<vmem>>, %arg5: memref<1x2x8x128xf32, #tpu.memory_space<vmem>>, %arg6: memref<1x2x8x128xf32, #tpu.memory_space<vmem>>) attributes {dimension_semantics = [#tpu.dimension_semantics<parallel>, #tpu.dimension_semantics<parallel>, #tpu.dimension_semantics<arbitrary>], iteration_bounds = array<i64: 1, 1, 1>, scalar_prefetch = 0 : i64, scratch_operands = 0 : i64, tpu.core_type = #tpu.core_type<tc>, window_params = [{transform_indices = @transform_0, window_bounds = array<i64: 1>}, {transform_indices = @transform_1, window_bounds = array<i64: 2, 8, 128>}, {transform_indices = @transform_2, window_bounds = array<i64: 1, 2, 8, 128>}, {transform_indices = @transform_3, window_bounds = array<i64: 1, 2, 8, 128>}]} {
    %c0_i32 = arith.constant 0 : i32
    %0 = arith.cmpi eq, %arg2, %c0_i32 : i32
    %1 = arith.extui %0 : i1 to i32
    %c0_i32_0 = arith.constant 0 : i32
    %2 = arith.cmpi ne, %1, %c0_i32_0 : i32
    scf.if %2 {
      %cst_26 = arith.constant 0.000000e+00 : f32
      %29 = vector.broadcast %cst_26 : f32 to vector<1x2x8x128xf32>
      %c0_27 = arith.constant 0 : index
      %c0_28 = arith.constant 0 : index
      %c0_29 = arith.constant 0 : index
      %c0_30 = arith.constant 0 : index
      %30 = vector.load %arg5[%c0_27, %c0_28, %c0_29, %c0_30] : memref<1x2x8x128xf32, #tpu.memory_space<vmem>>, vector<1x2x8x128xf32>
      tpu.vector_store %arg5[%c0_27, %c0_28, %c0_29, %c0_30], %29 {strides = array<i32>} : memref<1x2x8x128xf32, #tpu.memory_space<vmem>>, vector<1x2x8x128xf32>,
      %cst_31 = arith.constant 0.000000e+00 : f32
      %31 = vector.broadcast %cst_31 : f32 to vector<1x2x8x128xf32>
      %c0_32 = arith.constant 0 : index
      %c0_33 = arith.constant 0 : index
      %c0_34 = arith.constant 0 : index
      %c0_35 = arith.constant 0 : index
      %32 = vector.load %arg6[%c0_32, %c0_33, %c0_34, %c0_35] : memref<1x2x8x128xf32, #tpu.memory_space<vmem>>, vector<1x2x8x128xf32>
      tpu.vector_store %arg6[%c0_32, %c0_33, %c0_34, %c0_35], %31 {strides = array<i32>} : memref<1x2x8x128xf32, #tpu.memory_space<vmem>>, vector<1x2x8x128xf32>,
    } else {
    }
    %c0 = arith.constant 0 : index
    %3 = memref.load %arg3[%c0] : memref<1xf32, #tpu.memory_space<smem>>
    %c0_i32_1 = arith.constant 0 : i32
    %c1_i32 = arith.constant 1 : i32
    %4 = arith.muli %c0_i32_1, %c1_i32 : i32
    %c0_i32_2 = arith.constant 0 : i32
    %5 = arith.addi %c0_i32_2, %4 : i32
    %c8_i32 = arith.constant 8 : i32
    %6 = arith.muli %5, %c8_i32 : i32
    %7 = tpu.assume_multiple %6, 8 : i32
    %c0_3 = arith.constant 0 : index
    %8 = arith.index_cast %7 : i32 to index
    %c0_4 = arith.constant 0 : index
    %9 = vector.load %arg4[%c0_3, %8, %c0_4] : memref<2x8x128xf32, #tpu.memory_space<vmem>>, vector<2x8x128xf32>
    %10 = vector.broadcast %3 : f32 to vector<2x8x128xf32>
    %11 = arith.cmpf ogt, %9, %10 : vector<2x8x128xf32>
    %c0_5 = arith.constant 0 : index
    %c0_6 = arith.constant 0 : index
    %c0_7 = arith.constant 0 : index
    %c0_8 = arith.constant 0 : index
    %12 = vector.load %arg5[%c0_5, %c0_6, %c0_7, %c0_8] : memref<1x2x8x128xf32, #tpu.memory_space<vmem>>, vector<1x2x8x128xf32>
    %cst = arith.constant 0.000000e+00 : f32
    %13 = vector.broadcast %cst : f32 to vector<2x8x128xf32>
    %14 = arith.select %11, %9, %13 : vector<2x8x128xi1>, vector<2x8x128xf32>
    %15 = vector.shape_cast %14 : vector<2x8x128xf32> to vector<2x1x8x128xf32>
    %cst_9 = arith.constant dense<0.000000e+00> : vector<2x8x128xf32>
    %16 = vector.multi_reduction <add>, %15, %cst_9 [1] : vector<2x1x8x128xf32> to vector<2x8x128xf32>
    %17 = vector.shape_cast %16 : vector<2x8x128xf32> to vector<1x2x8x128xf32>
    %18 = arith.addf %12, %17 : vector<1x2x8x128xf32>
    %c0_10 = arith.constant 0 : index
    %c0_11 = arith.constant 0 : index
    %c0_12 = arith.constant 0 : index
    %c0_13 = arith.constant 0 : index
    %19 = vector.load %arg5[%c0_10, %c0_11, %c0_12, %c0_13] : memref<1x2x8x128xf32, #tpu.memory_space<vmem>>, vector<1x2x8x128xf32>
    tpu.vector_store %arg5[%c0_10, %c0_11, %c0_12, %c0_13], %18 {strides = array<i32>} : memref<1x2x8x128xf32, #tpu.memory_space<vmem>>, vector<1x2x8x128xf32>,
    %c0_14 = arith.constant 0 : index
    %c0_15 = arith.constant 0 : index
    %c0_16 = arith.constant 0 : index
    %c0_17 = arith.constant 0 : index
    %20 = vector.load %arg6[%c0_14, %c0_15, %c0_16, %c0_17] : memref<1x2x8x128xf32, #tpu.memory_space<vmem>>, vector<1x2x8x128xf32>
    %cst_18 = arith.constant 1.000000e+00 : f32
    %cst_19 = arith.constant 0.000000e+00 : f32
    %21 = vector.broadcast %cst_18 : f32 to vector<2x8x128xf32>
    %22 = vector.broadcast %cst_19 : f32 to vector<2x8x128xf32>
    %23 = arith.select %11, %21, %22 : vector<2x8x128xi1>, vector<2x8x128xf32>
    %24 = vector.shape_cast %23 : vector<2x8x128xf32> to vector<2x1x8x128xf32>
    %cst_20 = arith.constant dense<0.000000e+00> : vector<2x8x128xf32>
    %25 = vector.multi_reduction <add>, %24, %cst_20 [1] : vector<2x1x8x128xf32> to vector<2x8x128xf32>
    %26 = vector.shape_cast %25 : vector<2x8x128xf32> to vector<1x2x8x128xf32>
    %27 = arith.addf %20, %26 : vector<1x2x8x128xf32>
    %c0_21 = arith.constant 0 : index
    %c0_22 = arith.constant 0 : index
    %c0_23 = arith.constant 0 : index
    %c0_24 = arith.constant 0 : index
    %28 = vector.load %arg6[%c0_21, %c0_22, %c0_23, %c0_24] : memref<1x2x8x128xf32, #tpu.memory_space<vmem>>, vector<1x2x8x128xf32>
    tpu.vector_store %arg6[%c0_21, %c0_22, %c0_23, %c0_24], %27 {strides = array<i32>} : memref<1x2x8x128xf32, #tpu.memory_space<vmem>>, vector<1x2x8x128xf32>,
    %c1_i32_25 = arith.constant 1 : i32
    return
  }
  func.func @transform_0(%arg0: i32, %arg1: i32, %arg2: i32) -> i32 {
    %c0_i32 = arith.constant 0 : i32
    %c0_i32_0 = arith.constant 0 : i32
    return %c0_i32 : i32
  }
  func.func @transform_1(%arg0: i32, %arg1: i32, %arg2: i32) -> (i32, i32, i32) {
    %c1_i32 = arith.constant 1 : i32
    %0 = arith.muli %arg0, %c1_i32 : i32
    %1 = arith.addi %0, %arg2 : i32
    %c0_i32 = arith.constant 0 : i32
    %2 = arith.minsi %1, %c0_i32 : i32
    %c0_i32_0 = arith.constant 0 : i32
    %c0_i32_1 = arith.constant 0 : i32
    return %arg1, %2, %c0_i32_0 : i32, i32, i32
  }
  func.func @transform_2(%arg0: i32, %arg1: i32, %arg2: i32) -> (i32, i32, i32, i32) {
    %c0_i32 = arith.constant 0 : i32
    %c0_i32_0 = arith.constant 0 : i32
    %c0_i32_1 = arith.constant 0 : i32
    return %arg0, %arg1, %c0_i32, %c0_i32_0 : i32, i32, i32, i32
  }
  func.func @transform_3(%arg0: i32, %arg1: i32, %arg2: i32) -> (i32, i32, i32, i32) {
    %c0_i32 = arith.constant 0 : i32
    %c0_i32_0 = arith.constant 0 : i32
    %c0_i32_1 = arith.constant 0 : i32
    return %arg0, %arg1, %c0_i32, %c0_i32_0 : i32, i32, i32, i32
  }
}

</mosaic_0001>

<llo_original>
// kernel: div.3
$region0: #{div.3}
  #allocation2 [shape = 's32[1]{0}', space=sflag, size = 0x4, scoped, tag = 'scoped memory for div.3']
  %s0 = inlined_call_operand.vmem [shape: f32[2], index: 0, kind: input, shape index: {}]
  %s1 = inlined_call_operand.vmem [shape: f32[2], index: 1, kind: input, shape index: {}]
  %s2 = inlined_call_operand.hbm [shape: f32[2], index: 2, kind: output, shape index: {}]
  $region1: #{div.3} parent=0
    #allocation0 [shape = 'u8[512]{0}', space=vmem, size = 0x400, scoped, tag = 'operand span for operand 2']
    #allocation1 [shape = 's32[1]{0}', space=sflag, size = 0x4, scoped, tag = 'scoped memory for div.3']
    %3 = vsyncpa [#allocation1], 0
    %v4 = vld [vmem:[%s0] sm:$0x1]
    %v5 = vld [vmem:[%s1] sm:$0x1]
    %6 = xla_tuple %v4, %v5
    %7 = xla_tuple %6
    %v8 = vrcp.pop %v5
    %v9 = vmul.f32 %v5, %v8
    %v10 = vsub.f32 1.0, %v9
    %v11 = vmul.f32 %v8, %v10
    %v12 = vadd.f32 %v8, %v11
    %vm13 = vweird.f32 %v5
    %vm14 = vweird.f32 %v8
    %vm15 = vmor %vm13, %vm14
    %v16 = vsel %vm15, %v8, %v12
    %v17 = vand.u32 2147483647, %v5
    %vm18 = vcmp.eq.f32.partialorder %v17, 8.507059e+37
    %v19 = vand.u32 %v5, 2147483648
    %v20 = vor.u32 1.1754944e-38, %v19
    %v21 = vsel %vm18, %v20, %v16
    %v22 = vmul.f32 %v4, %v21
    %23 = xla_tuple %v22
    %24 = vst [vmem:[#allocation0] sm:$0x1] %v22
    %26 = vsyncadd [#allocation1], 0
    %s28 = sshll.u32 [#allocation0], 4
    %s29 = int_to_ptr.vmem [resolvable:$true] %s28
    %s30 = sshll.u32 %s2, 4
    %s31 = int_to_ptr.hbm [resolvable:$true] %s30
    %33 = dma.vmem_to_hbm [thread:$0]  %s29, 16, %s31, [#allocation1]
    %35 = dma.done [#allocation1], 16
    %36 = vsyncpa [#allocation1], 1

// kernel: adaptive_ohem_cross_entropy.3
$region0: #{adaptive_ohem_cross_entropy.3}
  #allocation0 [shape = 'u32[]', space=smem, size = 0x4, offset = 0x4, fixed_abs, tag = 'smem constant byte address 0x4 - core index']
  #allocation1 [shape = 'u32[72,128]{1,0:T(1,128)}', space=vmem, size = 0x9000, scoped, tag = 'internal scratch']
  #allocation2 [shape = 'f32[1]{0:T(128)S(6)}', space=smem, size = 0x200, scoped, tag = 'scoped memory for adaptive_ohem_cross_entropy.3']
  %s0 = inlined_call_operand.<no memory space> [shape: f32[1], index: 0, kind: input, shape index: {}]
  %s1 = inlined_call_operand.vmem [shape: f32[2,8,128], index: 1, kind: input, shape index: {}]
  %s2 = inlined_call_operand.vmem [shape: f32[1,2,8,128], index: 2, kind: output, shape index: {0}]
  %s3 = inlined_call_operand.vmem [shape: f32[1,2,8,128], index: 3, kind: output, shape index: {1}]
  %4 = xla_tuple %s2, %s3
  %s5 = sld [smem:[#allocation0]]
  $region30: #{adaptive_ohem_cross_entropy.3} parent=0
    _
  %s7 = ssub.s32 1, %s5
  %s8 = scalar_select 0, %s7, %s5
  %9 = sst [smem:[#allocation2]] %s0
  // Predicated region
  $region2: #{adaptive_ohem_cross_entropy.3} parent=0 // pred_check
    _
  $region3: #{adaptive_ohem_cross_entropy.3} parent=0 // pred_check_branch
    %11 = sbr.rel (0) target = $region5
  $region4: #{adaptive_ohem_cross_entropy.3} parent=0 // pred_region
    _
  $region5: #{adaptive_ohem_cross_entropy.3} parent=0 // pred_fallthru
    _
  // Predicated region
  $region6: #{adaptive_ohem_cross_entropy.3} parent=0 // pred_check
    _
  $region7: #{adaptive_ohem_cross_entropy.3} parent=0 // pred_check_branch
    %13 = sbr.rel (0) target = $region9
  $region8: #{adaptive_ohem_cross_entropy.3} parent=0 // pred_region
    %s14 = sadd.s32 0, 0
    %p15 = scmp.lt.s32.totalorder %s14, 0
    %s16 = scalar_select %p15, %s14, 0
    %p17 = scmp.lt.s32.totalorder %s16, 0
    %s18 = scalar_select %p17, %s16, 0
    %s19 = smul.addr %s18, 8
    %s20 = scalar_lea.vmem %s1, %s19
    %s21 = sadd.s32 0, 0
    %p22 = scmp.lt.s32.totalorder %s21, 0
    %s23 = scalar_select %p22, %s21, 0
  $region9: #{adaptive_ohem_cross_entropy.3} parent=0 // pred_fallthru
    _
  %s24 = sadd.s32 0, 0
  %p25 = scmp.lt.s32.totalorder %s24, 0
  %s26 = scalar_select %p25, %s24, 0
  %p27 = scmp.lt.s32.totalorder %s26, 0
  %s28 = scalar_select %p27, %s26, 0
  %s29 = smul.addr %s28, 8
  %s30 = scalar_lea.vmem %s1, %s29
  %s31 = sadd.s32 0, 0
  %p32 = scmp.lt.s32.totalorder %s31, 0
  %s33 = scalar_select %p32, %s31, 0
  %p34 = scmp.lt.s32.totalorder %s33, 0
  %s35 = scalar_select %p34, %s33, 0
  %s36 = smul.addr %s35, 8
  %s37 = scalar_lea.vmem %s1, %s36
  %s38 = sadd.s32 0, 0
  %p39 = scmp.lt.s32.totalorder %s38, 0
  %s40 = scalar_select %p39, %s38, 0
  %p41 = scmp.eq.s32.totalorder 0, 0
  // Predicated region
  $region10: #{adaptive_ohem_cross_entropy.3} parent=0 // pred_check
    %p42 = pneg %p41
  $region11: #{adaptive_ohem_cross_entropy.3} parent=0 // pred_check_branch
    %44 = sbr.rel (%p42) target = $region13
  $region12: #{adaptive_ohem_cross_entropy.3} parent=0 // pred_region
    %45 = vst [vmem:[%s2] sm:$0xff] 0.0
    %46 = vst [vmem:[%s2 + $0x8] sm:$0xff] 0.0
    %47 = vst [vmem:[%s3] sm:$0xff] 0.0
    %48 = vst [vmem:[%s3 + $0x8] sm:$0xff] 0.0
  $region13: #{adaptive_ohem_cross_entropy.3} parent=0 // pred_fallthru
    _
  %s49 = sld [smem:[#allocation2]]
  %v50 = vld [vmem:[%s37] sm:$0xff]
  %v51 = vld [vmem:[%s37 + $0x8] sm:$0xff]
  %v52 = vstv %s49
  %vm53 = vcmp.gt.f32.partialorder %v50, %v52
  %vm54 = vcmp.gt.f32.partialorder %v51, %v52
  %v55 = vld [vmem:[%s2] sm:$0xff]
  %v56 = vld [vmem:[%s2 + $0x8] sm:$0xff]
  %v57 = vsel %vm53, %v50, 0.0
  %v58 = vsel %vm54, %v51, 0.0
  %v59 = vadd.f32 %v57, 0.0
  %v60 = vadd.f32 %v58, 0.0
  %v61 = vadd.f32 %v55, %v59
  %v62 = vadd.f32 %v56, %v60
  %63 = vst [vmem:[%s2] sm:$0xff] %v61
  %64 = vst [vmem:[%s2 + $0x8] sm:$0xff] %v62
  %v65 = vld [vmem:[%s3] sm:$0xff]
  %v66 = vld [vmem:[%s3 + $0x8] sm:$0xff]
  %v67 = vsel %vm53, 1.0, 0.0
  %v68 = vsel %vm54, 1.0, 0.0
  %v69 = vadd.f32 %v67, 0.0
  %v70 = vadd.f32 %v68, 0.0
  %v71 = vadd.f32 %v65, %v69
  %v72 = vadd.f32 %v66, %v70
  %73 = vst [vmem:[%s3] sm:$0xff] %v71
  %74 = vst [vmem:[%s3 + $0x8] sm:$0xff] %v72
  // Predicated region
  $region14: #{adaptive_ohem_cross_entropy.3} parent=0 // pred_check
    _
  $region15: #{adaptive_ohem_cross_entropy.3} parent=0 // pred_check_branch
    %76 = sbr.rel (0) target = $region17
  $region16: #{adaptive_ohem_cross_entropy.3} parent=0 // pred_region
    _
  $region17: #{adaptive_ohem_cross_entropy.3} parent=0 // pred_fallthru
    _
  // Predicated region
  $region18: #{adaptive_ohem_cross_entropy.3} parent=0 // pred_check
    _
  $region19: #{adaptive_ohem_cross_entropy.3} parent=0 // pred_check_branch
    %78 = sbr.rel (0) target = $region21
  $region20: #{adaptive_ohem_cross_entropy.3} parent=0 // pred_region
    _
  $region21: #{adaptive_ohem_cross_entropy.3} parent=0 // pred_fallthru
    _
  // Predicated region
  $region22: #{adaptive_ohem_cross_entropy.3} parent=0 // pred_check
    _
  $region23: #{adaptive_ohem_cross_entropy.3} parent=0 // pred_check_branch
    %80 = sbr.rel (0) target = $region25
  $region24: #{adaptive_ohem_cross_entropy.3} parent=0 // pred_region
    _
  $region25: #{adaptive_ohem_cross_entropy.3} parent=0 // pred_fallthru
    _
  // Predicated region
  $region26: #{adaptive_ohem_cross_entropy.3} parent=0 // pred_check
    _
  $region27: #{adaptive_ohem_cross_entropy.3} parent=0 // pred_check_branch
    %82 = sbr.rel (0) target = $region29
  $region28: #{adaptive_ohem_cross_entropy.3} parent=0 // pred_region
    _
  $region29: #{adaptive_ohem_cross_entropy.3} parent=0 // pred_fallthru
    _

// kernel: adaptive_ohem_cross_entropy.2
$region0: #{adaptive_ohem_cross_entropy.2}
  #allocation0 [shape = 'u32[]', space=smem, size = 0x4, offset = 0x4, fixed_abs, tag = 'smem constant byte address 0x4 - core index']
  #allocation1 [shape = 'u32[72,128]{1,0:T(1,128)}', space=vmem, size = 0x9000, scoped, tag = 'internal scratch']
  %s0 = inlined_call_operand.vmem [shape: f32[2,8,128], index: 0, kind: input, shape index: {}]
  %s1 = inlined_call_operand.vmem [shape: f32[2,8,128], index: 1, kind: input, shape index: {}]
  %s2 = inlined_call_operand.vmem [shape: f32[2,8,128], index: 2, kind: output, shape index: {0}]
  %s3 = inlined_call_operand.vmem [shape: f32[1,2,8,128], index: 3, kind: output, shape index: {1}]
  %4 = xla_tuple %s2, %s3
  %s5 = sld [smem:[#allocation0]]
  $region30: #{adaptive_ohem_cross_entropy.2} parent=0
    _
  %s7 = ssub.s32 1, %s5
  %s8 = scalar_select 0, %s7, %s5
  // Predicated region
  $region2: #{adaptive_ohem_cross_entropy.2} parent=0 // pred_check
    _
  $region3: #{adaptive_ohem_cross_entropy.2} parent=0 // pred_check_branch
    %10 = sbr.rel (0) target = $region5
  $region4: #{adaptive_ohem_cross_entropy.2} parent=0 // pred_region
    %s11 = sadd.s32 0, 0
    %p12 = scmp.lt.s32.totalorder %s11, 0
    %s13 = scalar_select %p12, %s11, 0
    %p14 = scmp.lt.s32.totalorder %s13, 0
    %s15 = scalar_select %p14, %s13, 0
    %s16 = smul.addr %s15, 8
    %s17 = scalar_lea.vmem %s0, %s16
    %s18 = sadd.s32 0, 0
    %p19 = scmp.lt.s32.totalorder %s18, 0
    %s20 = scalar_select %p19, %s18, 0
  $region5: #{adaptive_ohem_cross_entropy.2} parent=0 // pred_fallthru
    _
  // Predicated region
  $region6: #{adaptive_ohem_cross_entropy.2} parent=0 // pred_check
    _
  $region7: #{adaptive_ohem_cross_entropy.2} parent=0 // pred_check_branch
    %22 = sbr.rel (0) target = $region9
  $region8: #{adaptive_ohem_cross_entropy.2} parent=0 // pred_region
    %s23 = sadd.s32 0, 0
    %p24 = scmp.lt.s32.totalorder %s23, 0
    %s25 = scalar_select %p24, %s23, 0
    %p26 = scmp.lt.s32.totalorder %s25, 0
    %s27 = scalar_select %p26, %s25, 0
    %s28 = smul.addr %s27, 8
    %s29 = scalar_lea.vmem %s1, %s28
    %s30 = sadd.s32 0, 0
    %p31 = scmp.lt.s32.totalorder %s30, 0
    %s32 = scalar_select %p31, %s30, 0
  $region9: #{adaptive_ohem_cross_entropy.2} parent=0 // pred_fallthru
    _
  %s33 = sadd.s32 0, 0
  %p34 = scmp.lt.s32.totalorder %s33, 0
  %s35 = scalar_select %p34, %s33, 0
  %p36 = scmp.lt.s32.totalorder %s35, 0
  %s37 = scalar_select %p36, %s35, 0
  %s38 = smul.addr %s37, 8
  %s39 = scalar_lea.vmem %s0, %s38
  %s40 = sadd.s32 0, 0
  %p41 = scmp.lt.s32.totalorder %s40, 0
  %s42 = scalar_select %p41, %s40, 0
  %p43 = scmp.lt.s32.totalorder %s42, 0
  %s44 = scalar_select %p43, %s42, 0
  %s45 = smul.addr %s44, 8
  %s46 = scalar_lea.vmem %s1, %s45
  %s47 = sadd.s32 0, 0
  %p48 = scmp.lt.s32.totalorder %s47, 0
  %s49 = scalar_select %p48, %s47, 0
  %p50 = scmp.lt.s32.totalorder %s49, 0
  %s51 = scalar_select %p50, %s49, 0
  %s52 = smul.addr %s51, 8
  %s53 = scalar_lea.vmem %s2, %s52
  %s54 = sadd.s32 0, 0
  %p55 = scmp.lt.s32.totalorder %s54, 0
  %s56 = scalar_select %p55, %s54, 0
  %p57 = scmp.lt.s32.totalorder %s56, 0
  %s58 = scalar_select %p57, %s56, 0
  %s59 = smul.addr %s58, 8
  %s60 = scalar_lea.vmem %s0, %s59
  %s61 = sadd.s32 0, 0
  %p62 = scmp.lt.s32.totalorder %s61, 0
  %s63 = scalar_select %p62, %s61, 0
  %s64 = sadd.s32 0, 0
  %p65 = scmp.lt.s32.totalorder %s64, 0
  %s66 = scalar_select %p65, %s64, 0
  %p67 = scmp.lt.s32.totalorder %s66, 0
  %s68 = scalar_select %p67, %s66, 0
  %s69 = smul.addr %s68, 8
  %s70 = scalar_lea.vmem %s1, %s69
  %s71 = sadd.s32 0, 0
  %p72 = scmp.lt.s32.totalorder %s71, 0
  %s73 = scalar_select %p72, %s71, 0
  %s74 = sadd.s32 0, 0
  %p75 = scmp.lt.s32.totalorder %s74, 0
  %s76 = scalar_select %p75, %s74, 0
  %p77 = scmp.lt.s32.totalorder %s76, 0
  %s78 = scalar_select %p77, %s76, 0
  %s79 = smul.addr %s78, 8
  %s80 = scalar_lea.vmem %s2, %s79
  %s81 = sadd.s32 0, 0
  %p82 = scmp.lt.s32.totalorder %s81, 0
  %s83 = scalar_select %p82, %s81, 0
  %p84 = scmp.eq.s32.totalorder 0, 0
  // Predicated region
  $region10: #{adaptive_ohem_cross_entropy.2} parent=0 // pred_check
    %p85 = pneg %p84
  $region11: #{adaptive_ohem_cross_entropy.2} parent=0 // pred_check_branch
    %87 = sbr.rel (%p85) target = $region13
  $region12: #{adaptive_ohem_cross_entropy.2} parent=0 // pred_region
    %88 = vst [vmem:[%s3] sm:$0xff] 0.0
    %89 = vst [vmem:[%s3 + $0x8] sm:$0xff] 0.0
  $region13: #{adaptive_ohem_cross_entropy.2} parent=0 // pred_fallthru
    _
  %v90 = vld [vmem:[%s60] sm:$0xff]
  %v91 = vld [vmem:[%s60 + $0x8] sm:$0xff]
  %v92 = vld [vmem:[%s70] sm:$0xff]
  %v93 = vld [vmem:[%s70 + $0x8] sm:$0xff]
  %v94 = vlog2.pop %v90
  %v95 = vmul.f32 %v94, 0.6931472
  %v96 = vlog2.pop %v91
  %v97 = vmul.f32 %v96, 0.6931472
  %v98 = vmax.f32 %v95, -100.0
  %v99 = vmax.f32 %v97, -100.0
  %v100 = vsub.f32 1.0, %v90
  %v101 = vsub.f32 1.0, %v91
  %v102 = vlog2.pop %v100
  %v103 = vmul.f32 %v102, 0.6931472
  %v104 = vlog2.pop %v101
  %v105 = vmul.f32 %v104, 0.6931472
  %v106 = vmax.f32 %v103, -100.0
  %v107 = vmax.f32 %v105, -100.0
  %v108 = vmul.f32 %v92, %v98
  %v109 = vmul.f32 %v93, %v99
  %v110 = vsub.f32 1.0, %v92
  %v111 = vsub.f32 1.0, %v93
  %v112 = vmul.f32 %v110, %v106
  %v113 = vmul.f32 %v111, %v107
  %v114 = vadd.f32 %v108, %v112
  %v115 = vadd.f32 %v109, %v113
  %v116 = vsub.f32 0.0, %v114
  %v117 = vsub.f32 0.0, %v115
  %118 = vst [vmem:[%s80] sm:$0xff] %v116
  %119 = vst [vmem:[%s80 + $0x8] sm:$0xff] %v117
  %v120 = vld [vmem:[%s3] sm:$0xff]
  %v121 = vld [vmem:[%s3 + $0x8] sm:$0xff]
  %v122 = vadd.f32 %v116, 0.0
  %v123 = vadd.f32 %v117, 0.0
  %v124 = vadd.f32 %v120, %v122
  %v125 = vadd.f32 %v121, %v123
  %126 = vst [vmem:[%s3] sm:$0xff] %v124
  %127 = vst [vmem:[%s3 + $0x8] sm:$0xff] %v125
  %s128 = sadd.s32 0, 0
  %p129 = scmp.lt.s32.totalorder %s128, 0
  %s130 = scalar_select %p129, %s128, 0
  %p131 = scmp.lt.s32.totalorder %s130, 0
  %s132 = scalar_select %p131, %s130, 0
  %s133 = smul.addr %s132, 8
  %s134 = scalar_lea.vmem %s2, %s133
  // Predicated region
  $region14: #{adaptive_ohem_cross_entropy.2} parent=0 // pred_check
    _
  $region15: #{adaptive_ohem_cross_entropy.2} parent=0 // pred_check_branch
    %136 = sbr.rel (0) target = $region17
  $region16: #{adaptive_ohem_cross_entropy.2} parent=0 // pred_region
    %s137 = sadd.s32 0, 0
    %p138 = scmp.lt.s32.totalorder %s137, 0
    %s139 = scalar_select %p138, %s137, 0
  $region17: #{adaptive_ohem_cross_entropy.2} parent=0 // pred_fallthru
    _
  // Predicated region
  $region18: #{adaptive_ohem_cross_entropy.2} parent=0 // pred_check
    _
  $region19: #{adaptive_ohem_cross_entropy.2} parent=0 // pred_check_branch
    %141 = sbr.rel (0) target = $region21
  $region20: #{adaptive_ohem_cross_entropy.2} parent=0 // pred_region
    _
  $region21: #{adaptive_ohem_cross_entropy.2} parent=0 // pred_fallthru
    _
  // Predicated region
  $region22: #{adaptive_ohem_cross_entropy.2} parent=0 // pred_check
    _
  $region23: #{adaptive_ohem_cross_entropy.2} parent=0 // pred_check_branch
    %143 = sbr.rel (0) target = $region25
  $region24: #{adaptive_ohem_cross_entropy.2} parent=0 // pred_region
    %s144 = sadd.s32 0, 0
    %p145 = scmp.lt.s32.totalorder %s144, 0
    %s146 = scalar_select %p145, %s144, 0
    %p147 = scmp.lt.s32.totalorder %s146, 0
    %s148 = scalar_select %p147, %s146, 0
    %s149 = smul.addr %s148, 8
    %s150 = scalar_lea.vmem %s2, %s149
  $region25: #{adaptive_ohem_cross_entropy.2} parent=0 // pred_fallthru
    _
  // Predicated region
  $region26: #{adaptive_ohem_cross_entropy.2} parent=0 // pred_check
    _
  $region27: #{adaptive_ohem_cross_entropy.2} parent=0 // pred_check_branch
    %152 = sbr.rel (0) target = $region29
  $region28: #{adaptive_ohem_cross_entropy.2} parent=0 // pred_region
    _
  $region29: #{adaptive_ohem_cross_entropy.2} parent=0 // pred_fallthru
    _

</llo_original>
